<compile_context>
chip_gen: v7x
topology: tpu7x:2x2x1
jax: 0.10.0
libtpu: 0.0.40
codegen_flags: <defaults>
</compile_context>

<pallas_src>
import jax
import jax.numpy as jnp
from jax.experimental import pallas as pl
from jax.experimental.pallas import tpu as pltpu


def _round_up(x, m):
    return ((x + m - 1) // m) * m


def _round_down(x, m):
    return (x // m) * m


def _device_kind():
    try:
        return jax.devices()[0].device_kind.lower()
    except Exception:
        return ""


def _choose_tiles(N, HW, stream_bytes, budget, row_tile, hw_tile):
    """Pick (row_tile T, spatial tile HW_T).  All inputs are Python ints."""
    # stream_bytes already counts both double-buffered input streams;
    # +16 bytes/element headroom for f32 temporaries inside the kernel.
    per_elem = stream_bytes + 16

    if hw_tile is not None:
        hw_t = max(128, _round_up(int(hw_tile), 128))
    elif 8 * HW * per_elem <= budget:
        hw_t = HW                       # keep the spatial axis whole (lane-dense)
    else:
        hw_t = max(128, _round_down(budget // (8 * per_elem), 128))
    if hw_t >= HW:
        hw_t = HW

    if row_tile is not None:
        t = max(8, _round_up(int(row_tile), 8))
    else:
        t = _round_down(budget // (max(hw_t, 1) * per_elem), 8)
        t = max(8, min(t, 1024))
    t = max(8, min(t, _round_up(N, 8)))
    return t, hw_t


def _make_kernel(N, HW, T, HW_T, inner, hw_blocks, needs_row_mask, needs_col_mask):
    """Build the kernel body (all sizes / flags are trace-time constants)."""

    def kernel(out_ref, lab_ref, part_ref, acc_col, m_col, sxx, sxy, syy):
        c = pl.program_id(0)          # partial / TensorCore slice
        i = pl.program_id(1)          # row-block index within this partial
        j = pl.program_id(2)          # spatial (HW) block index

        # Zero the per-partial loss accumulator once per partial.
        @pl.when(jnp.logical_and(i == 0, j == 0))
        def _():
            acc_col[...] = jnp.zeros_like(acc_col)

        # Reset the per-row online stats at the start of each row block's HW sweep.
        @pl.when(j == 0)
        def _():
            m_col[...] = jnp.full_like(m_col, -jnp.inf)
            sxx[...] = jnp.zeros_like(sxx)
            sxy[...] = jnp.zeros_like(sxy)
            syy[...] = jnp.zeros_like(syy)

        # Stream in native dtype (bf16 stays bf16 over HBM), upcast on the VPU.
        x = out_ref[...].astype(jnp.float32)      # (T, HW_T)
        y = lab_ref[...].astype(jnp.float32)

        if needs_col_mask:
            col = j * HW_T + jax.lax.broadcasted_iota(jnp.int32, (1, HW_T), 1)
            cmask = col < HW
            x_for_max = jnp.where(cmask, x, -jnp.inf)
            x = jnp.where(cmask, x, 0.0)
            y = jnp.where(cmask, y, 0.0)
        else:
            x_for_max = x

        # Online per-(batch, channel) spatial max == per-row running max.
        m_col[...] = jnp.maximum(m_col[...],
                                 jnp.max(x_for_max, axis=-1, keepdims=True))

        # (x/m - y)^2/(1.1-y) = (x^2 - 2xy*m + y^2*m^2) / (m^2*(1.1-y)):
        # accumulate the three m-independent per-row sums so the spatial axis can
        # be blocked with no rescale pass.  One divide per element, rest are muls.
        w = 1.0 / (1.1 - y)
        xw = x * w
        yw = y * w
        sxx[...] += jnp.sum(x * xw, axis=-1, keepdims=True)
        sxy[...] += jnp.sum(x * yw, axis=-1, keepdims=True)
        syy[...] += jnp.sum(y * yw, axis=-1, keepdims=True)

        # End of this row block's HW sweep: combine with 1/max, mask padded rows,
        # and add to the per-partial (T, 1) loss accumulator.
        @pl.when(j == hw_blocks - 1)
        def _():
            inv_m = 1.0 / m_col[...]                      # one reciprocal per row
            row_val = (sxx[...] * inv_m - 2.0 * sxy[...]) * inv_m + syy[...]
            if needs_row_mask:
                row0 = (c * inner + i) * T
                rid = row0 + jax.lax.broadcasted_iota(jnp.int32, (T, 1), 0)
                row_val = jnp.where(rid < N, row_val, 0.0)
            acc_col[...] += row_val

        # End of this partial: one small cross-sublane reduce, lane-dense store.
        @pl.when(jnp.logical_and(i == inner - 1, j == hw_blocks - 1))
        def _():
            s = jnp.sum(acc_col[...])
            part_ref[...] = jnp.zeros((1, 8, 128), jnp.float32) + s

    return kernel


def mod_mse_loss(output, label, prior, *, row_tile=None, hw_tile=None,
                 num_partials=None):
    """JAX/Pallas forward of ModMSELoss.

    output, label: (B, C, H, W); prior: (Pr, Pc).  Returns a scalar f32 loss.
    Matches the PyTorch reference, including inf/NaN when a (b, c) slab of
    `output` has spatial max == 0 (the divide-by-max is intentionally unguarded).
    """
    if not jnp.issubdtype(output.dtype, jnp.floating):
        output = output.astype(jnp.float32)
    if not jnp.issubdtype(label.dtype, jnp.floating):
        label = label.astype(jnp.float32)
    prior = prior.astype(jnp.float32)

    B, C, H, W = output.shape
    N, HW = B * C, H * W

    out_flat = output.reshape(N, HW)
    lab_flat = label.reshape(N, HW)

    kind = _device_kind()
    is_v7 = "v7" in kind
    # v7x: 64 MiB VMEM per TensorCore -> keep the per-core block budget small.
    # v5e/v6e: 128 MiB physical VMEM  -> larger tiles, fewer grid steps.
    budget = (20 if is_v7 else 48) * 1024 * 1024
    vmem_limit = (48 if is_v7 else 96) * 1024 * 1024

    # Both input streams, double-buffered, in their native dtypes.
    stream_bytes = 2 * (out_flat.dtype.itemsize + lab_flat.dtype.itemsize)
    T, HW_T = _choose_tiles(N, HW, stream_bytes, budget, row_tile, hw_tile)

    n_row_blocks = pl.cdiv(N, T)
    hw_blocks = pl.cdiv(HW, HW_T)

    if num_partials is None:
        num_partials = 2 if is_v7 else 1   # split row blocks across v7x's two TCs
    num_partials = int(max(1, min(num_partials, n_row_blocks)))

    n_padded = _round_up(n_row_blocks, num_partials)
    inner = n_padded // num_partials
    clamp_blocks = n_padded != n_row_blocks
    needs_row_mask = (num_partials * inner * T) != N
    needs_col_mask = (hw_blocks * HW_T) != HW
    last_block = n_row_blocks - 1

    def row_block(c, i):
        b = c * inner + i
        if clamp_blocks:
            b = jnp.minimum(b, last_block)   # duplicate blocks are fully row-masked
        return b

    in_spec = pl.BlockSpec((T, HW_T), lambda c, i, j: (row_block(c, i), j))

    kernel = _make_kernel(N, HW, T, HW_T, inner, hw_blocks,
                          needs_row_mask, needs_col_mask)

    if is_v7 and num_partials > 1:
        sem0 = getattr(pltpu, "CORE_PARALLEL", pltpu.PARALLEL)  # true dual-TC sharding
    else:
        sem0 = pltpu.PARALLEL

    partials = pl.pallas_call(
        kernel,
        out_shape=jax.ShapeDtypeStruct((num_partials, 8, 128), jnp.float32),
        grid_spec=pltpu.PrefetchScalarGridSpec(
            num_scalar_prefetch=0,
            grid=(num_partials, inner, hw_blocks),
            in_specs=[in_spec, in_spec],
            out_specs=pl.BlockSpec((1, 8, 128), lambda c, i, j: (c, 0, 0)),
            scratch_shapes=[
                pltpu.VMEM((T, 1), jnp.float32),   # per-partial loss rows
                pltpu.VMEM((T, 1), jnp.float32),   # running per-row max
                pltpu.VMEM((T, 1), jnp.float32),   # sum x^2 / (1.1 - y)
                pltpu.VMEM((T, 1), jnp.float32),   # sum x*y / (1.1 - y)
                pltpu.VMEM((T, 1), jnp.float32),   # sum y^2 / (1.1 - y)
            ],
        ),
        compiler_params=pltpu.CompilerParams(
            dimension_semantics=(sem0, pltpu.ARBITRARY, pltpu.ARBITRARY),
            vmem_limit_bytes=vmem_limit,
        ),
    )(out_flat, lab_flat)

    total = jnp.sum(partials[:, 0, 0])

    # Regularizer: tiny O(Pr*Pc) reduction, kept in plain JAX (no extra stream).
    pr, pc = prior.shape
    reg_sum = jnp.sum((1.0 - prior) ** 2) / float(pr * pc)

    return total * (1.0 / float(N * HW)) + reg_sum


def mod_mse_loss_ref(output, label, prior):
    """Pure-JAX reference mirroring the PyTorch forward (f32 math)."""
    output = output.astype(jnp.float32)
    label = label.astype(jnp.float32)
    prior = prior.astype(jnp.float32)
    out_max = jnp.max(output, axis=(2, 3), keepdims=True)
    pr, pc = prior.shape
    reg = (1.0 / (pr * pc)) * (1.0 - prior) ** 2
    return jnp.mean((output / out_max - label) ** 2 / (1.1 - label)) + jnp.sum(reg)


if __name__ == "__main__":
    key = jax.random.PRNGKey(0)
    ks = jax.random.split(key, 6)

    # Case 1: canonical small saliency shapes (single block, no masking).
    B, C, H, W = 2, 4, 16, 16
    Pr, Pc = 16, 16
    output = jax.random.uniform(ks[0], (B, C, H, W), jnp.float32, 0.1, 2.0)
    label = jax.random.uniform(ks[1], (B, C, H, W), jnp.float32, 0.0, 1.0)
    prior = jax.random.uniform(ks[2], (Pr, Pc), jnp.float32, 0.0, 1.0)
    loss = jax.block_until_ready(mod_mse_loss(output, label, prior))
    ref = mod_mse_loss_ref(output, label, prior)
    assert jnp.allclose(loss, ref, rtol=1e-5, atol=1e-5), (loss, ref)

    # Case 2: bf16 inputs streamed directly (no wrapper upcast copy in HBM).
    out_bf = output.astype(jnp.bfloat16)
    lab_bf = label.astype(jnp.bfloat16)
    loss_bf = jax.block_until_ready(mod_mse_loss(out_bf, lab_bf, prior))
    ref_bf = mod_mse_loss_ref(out_bf, lab_bf, prior)
    assert jnp.allclose(loss_bf, ref_bf, rtol=1e-4, atol=1e-4), (loss_bf, ref_bf)

    # Case 3: ragged rows + blocked spatial axis + 2 partials (exercises the
    # row/column masking, the HW-blocking online-max path and the parallel axis).
    B2, C2, H2, W2 = 2, 5, 13, 11
    output2 = jax.random.uniform(ks[3], (B2, C2, H2, W2), jnp.float32, 0.05, 3.0)
    label2 = jax.random.uniform(ks[4], (B2, C2, H2, W2), jnp.float32, 0.0, 1.0)
    prior2 = jax.random.uniform(ks[5], (8, 8), jnp.float32, 0.0, 1.0)
    loss2 = jax.block_until_ready(
        mod_mse_loss(output2, label2, prior2, row_tile=8, hw_tile=128,
                     num_partials=2))
    ref2 = mod_mse_loss_ref(output2, label2, prior2)
    assert jnp.allclose(loss2, ref2, rtol=1e-5, atol=1e-5), (loss2, ref2)

    print("KERNEL_OK")
</pallas_src>

<mosaic_0001>
module attributes {stable_mosaic.version = 11 : i64} {
  func.func @kernel(%arg0: i32, %arg1: i32, %arg2: i32, %arg3: memref<8x256xf32, #tpu.memory_space<vmem>>, %arg4: memref<8x256xf32, #tpu.memory_space<vmem>>, %arg5: memref<1x8x128xf32, #tpu.memory_space<vmem>>, %arg6: memref<8x1xf32, #tpu.memory_space<vmem>>, %arg7: memref<8x1xf32, #tpu.memory_space<vmem>>, %arg8: memref<8x1xf32, #tpu.memory_space<vmem>>, %arg9: memref<8x1xf32, #tpu.memory_space<vmem>>, %arg10: memref<8x1xf32, #tpu.memory_space<vmem>>) attributes {dimension_semantics = [#tpu.dimension_semantics<parallel>, #tpu.dimension_semantics<arbitrary>, #tpu.dimension_semantics<arbitrary>], iteration_bounds = array<i64: 1, 1, 1>, scalar_prefetch = 0 : i64, scratch_operands = 5 : i64, tpu.core_type = #tpu.core_type<tc>, window_params = [{transform_indices = @transform_0, window_bounds = array<i64: 8, 256>}, {transform_indices = @transform_1, window_bounds = array<i64: 8, 256>}, {transform_indices = @transform_2, window_bounds = array<i64: 1, 8, 128>}]} {
    %c0_i32 = arith.constant 0 : i32
    %0 = arith.cmpi eq, %arg1, %c0_i32 : i32
    %c0_i32_0 = arith.constant 0 : i32
    %1 = arith.cmpi eq, %arg2, %c0_i32_0 : i32
    %2 = arith.andi %0, %1 : i1
    %3 = arith.extui %2 : i1 to i32
    %c0_i32_1 = arith.constant 0 : i32
    %4 = arith.cmpi ne, %3, %c0_i32_1 : i32
    scf.if %4 {
      %cst_33 = arith.constant 0.000000e+00 : f32
      %47 = vector.broadcast %cst_33 : f32 to vector<8x1xf32>
      %c0_34 = arith.constant 0 : index
      %c0_35 = arith.constant 0 : index
      %48 = vector.load %arg6[%c0_34, %c0_35] : memref<8x1xf32, #tpu.memory_space<vmem>>, vector<8x1xf32>
      tpu.vector_store %arg6[%c0_34, %c0_35], %47 {strides = array<i32>} : memref<8x1xf32, #tpu.memory_space<vmem>>, vector<8x1xf32>,
    } else {
    }
    %c0_i32_2 = arith.constant 0 : i32
    %5 = arith.cmpi eq, %arg2, %c0_i32_2 : i32
    %6 = arith.extui %5 : i1 to i32
    %c0_i32_3 = arith.constant 0 : i32
    %7 = arith.cmpi ne, %6, %c0_i32_3 : i32
    scf.if %7 {
      %cst_33 = arith.constant 0xFF800000 : f32
      %47 = vector.broadcast %cst_33 : f32 to vector<8x1xf32>
      %c0_34 = arith.constant 0 : index
      %c0_35 = arith.constant 0 : index
      %48 = vector.load %arg7[%c0_34, %c0_35] : memref<8x1xf32, #tpu.memory_space<vmem>>, vector<8x1xf32>
      tpu.vector_store %arg7[%c0_34, %c0_35], %47 {strides = array<i32>} : memref<8x1xf32, #tpu.memory_space<vmem>>, vector<8x1xf32>,
      %cst_36 = arith.constant 0.000000e+00 : f32
      %49 = vector.broadcast %cst_36 : f32 to vector<8x1xf32>
      %c0_37 = arith.constant 0 : index
      %c0_38 = arith.constant 0 : index
      %50 = vector.load %arg8[%c0_37, %c0_38] : memref<8x1xf32, #tpu.memory_space<vmem>>, vector<8x1xf32>
      tpu.vector_store %arg8[%c0_37, %c0_38], %49 {strides = array<i32>} : memref<8x1xf32, #tpu.memory_space<vmem>>, vector<8x1xf32>,
      %cst_39 = arith.constant 0.000000e+00 : f32
      %51 = vector.broadcast %cst_39 : f32 to vector<8x1xf32>
      %c0_40 = arith.constant 0 : index
      %c0_41 = arith.constant 0 : index
      %52 = vector.load %arg9[%c0_40, %c0_41] : memref<8x1xf32, #tpu.memory_space<vmem>>, vector<8x1xf32>
      tpu.vector_store %arg9[%c0_40, %c0_41], %51 {strides = array<i32>} : memref<8x1xf32, #tpu.memory_space<vmem>>, vector<8x1xf32>,
      %cst_42 = arith.constant 0.000000e+00 : f32
      %53 = vector.broadcast %cst_42 : f32 to vector<8x1xf32>
      %c0_43 = arith.constant 0 : index
      %c0_44 = arith.constant 0 : index
      %54 = vector.load %arg10[%c0_43, %c0_44] : memref<8x1xf32, #tpu.memory_space<vmem>>, vector<8x1xf32>
      tpu.vector_store %arg10[%c0_43, %c0_44], %53 {strides = array<i32>} : memref<8x1xf32, #tpu.memory_space<vmem>>, vector<8x1xf32>,
    } else {
    }
    %c0 = arith.constant 0 : index
    %c0_4 = arith.constant 0 : index
    %8 = vector.load %arg3[%c0, %c0_4] : memref<8x256xf32, #tpu.memory_space<vmem>>, vector<8x256xf32>
    %c0_5 = arith.constant 0 : index
    %c0_6 = arith.constant 0 : index
    %9 = vector.load %arg4[%c0_5, %c0_6] : memref<8x256xf32, #tpu.memory_space<vmem>>, vector<8x256xf32>
    %c0_7 = arith.constant 0 : index
    %c0_8 = arith.constant 0 : index
    %10 = vector.load %arg7[%c0_7, %c0_8] : memref<8x1xf32, #tpu.memory_space<vmem>>, vector<8x1xf32>
    %cst = arith.constant dense<0xFF800000> : vector<8xf32>
    %11 = vector.multi_reduction <maximumf>, %8, %cst [1] : vector<8x256xf32> to vector<8xf32>
    %12 = vector.shape_cast %11 : vector<8xf32> to vector<8x1xf32>
    %13 = arith.maximumf %10, %12 : vector<8x1xf32>
    %c0_9 = arith.constant 0 : index
    %c0_10 = arith.constant 0 : index
    %14 = vector.load %arg7[%c0_9, %c0_10] : memref<8x1xf32, #tpu.memory_space<vmem>>, vector<8x1xf32>
    tpu.vector_store %arg7[%c0_9, %c0_10], %13 {strides = array<i32>} : memref<8x1xf32, #tpu.memory_space<vmem>>, vector<8x1xf32>,
    %cst_11 = arith.constant 1.100000e+00 : f32
    %15 = vector.broadcast %cst_11 : f32 to vector<8x256xf32>
    %16 = arith.subf %15, %9 : vector<8x256xf32>
    %cst_12 = arith.constant 1.000000e+00 : f32
    %17 = vector.broadcast %cst_12 : f32 to vector<8x256xf32>
    %18 = arith.divf %17, %16 : vector<8x256xf32>
    %19 = arith.mulf %8, %18 : vector<8x256xf32>
    %20 = arith.mulf %9, %18 : vector<8x256xf32>
    %c0_13 = arith.constant 0 : index
    %c0_14 = arith.constant 0 : index
    %21 = vector.load %arg8[%c0_13, %c0_14] : memref<8x1xf32, #tpu.memory_space<vmem>>, vector<8x1xf32>
    %22 = arith.mulf %8, %19 : vector<8x256xf32>
    %cst_15 = arith.constant dense<0.000000e+00> : vector<8xf32>
    %23 = vector.multi_reduction <add>, %22, %cst_15 [1] : vector<8x256xf32> to vector<8xf32>
    %24 = vector.shape_cast %23 : vector<8xf32> to vector<8x1xf32>
    %25 = arith.addf %21, %24 : vector<8x1xf32>
    %c0_16 = arith.constant 0 : index
    %c0_17 = arith.constant 0 : index
    %26 = vector.load %arg8[%c0_16, %c0_17] : memref<8x1xf32, #tpu.memory_space<vmem>>, vector<8x1xf32>
    tpu.vector_store %arg8[%c0_16, %c0_17], %25 {strides = array<i32>} : memref<8x1xf32, #tpu.memory_space<vmem>>, vector<8x1xf32>,
    %c0_18 = arith.constant 0 : index
    %c0_19 = arith.constant 0 : index
    %27 = vector.load %arg9[%c0_18, %c0_19] : memref<8x1xf32, #tpu.memory_space<vmem>>, vector<8x1xf32>
    %28 = arith.mulf %8, %20 : vector<8x256xf32>
    %cst_20 = arith.constant dense<0.000000e+00> : vector<8xf32>
    %29 = vector.multi_reduction <add>, %28, %cst_20 [1] : vector<8x256xf32> to vector<8xf32>
    %30 = vector.shape_cast %29 : vector<8xf32> to vector<8x1xf32>
    %31 = arith.addf %27, %30 : vector<8x1xf32>
    %c0_21 = arith.constant 0 : index
    %c0_22 = arith.constant 0 : index
    %32 = vector.load %arg9[%c0_21, %c0_22] : memref<8x1xf32, #tpu.memory_space<vmem>>, vector<8x1xf32>
    tpu.vector_store %arg9[%c0_21, %c0_22], %31 {strides = array<i32>} : memref<8x1xf32, #tpu.memory_space<vmem>>, vector<8x1xf32>,
    %c0_23 = arith.constant 0 : index
    %c0_24 = arith.constant 0 : index
    %33 = vector.load %arg10[%c0_23, %c0_24] : memref<8x1xf32, #tpu.memory_space<vmem>>, vector<8x1xf32>
    %34 = arith.mulf %9, %20 : vector<8x256xf32>
    %cst_25 = arith.constant dense<0.000000e+00> : vector<8xf32>
    %35 = vector.multi_reduction <add>, %34, %cst_25 [1] : vector<8x256xf32> to vector<8xf32>
    %36 = vector.shape_cast %35 : vector<8xf32> to vector<8x1xf32>
    %37 = arith.addf %33, %36 : vector<8x1xf32>
    %c0_26 = arith.constant 0 : index
    %c0_27 = arith.constant 0 : index
    %38 = vector.load %arg10[%c0_26, %c0_27] : memref<8x1xf32, #tpu.memory_space<vmem>>, vector<8x1xf32>
    tpu.vector_store %arg10[%c0_26, %c0_27], %37 {strides = array<i32>} : memref<8x1xf32, #tpu.memory_space<vmem>>, vector<8x1xf32>,
    %c0_i32_28 = arith.constant 0 : i32
    %39 = arith.cmpi eq, %arg2, %c0_i32_28 : i32
    %40 = arith.extui %39 : i1 to i32
    %c0_i32_29 = arith.constant 0 : i32
    %41 = arith.cmpi ne, %40, %c0_i32_29 : i32
    scf.if %41 {
      %c0_33 = arith.constant 0 : index
      %c0_34 = arith.constant 0 : index
      %47 = vector.load %arg7[%c0_33, %c0_34] : memref<8x1xf32, #tpu.memory_space<vmem>>, vector<8x1xf32>
      %cst_35 = arith.constant 1.000000e+00 : f32
      %48 = vector.broadcast %cst_35 : f32 to vector<8x1xf32>
      %49 = arith.divf %48, %47 : vector<8x1xf32>
      %c0_36 = arith.constant 0 : index
      %c0_37 = arith.constant 0 : index
      %50 = vector.load %arg8[%c0_36, %c0_37] : memref<8x1xf32, #tpu.memory_space<vmem>>, vector<8x1xf32>
      %51 = arith.mulf %50, %49 : vector<8x1xf32>
      %c0_38 = arith.constant 0 : index
      %c0_39 = arith.constant 0 : index
      %52 = vector.load %arg9[%c0_38, %c0_39] : memref<8x1xf32, #tpu.memory_space<vmem>>, vector<8x1xf32>
      %cst_40 = arith.constant 2.000000e+00 : f32
      %53 = vector.broadcast %cst_40 : f32 to vector<8x1xf32>
      %54 = arith.mulf %53, %52 : vector<8x1xf32>
      %55 = arith.subf %51, %54 : vector<8x1xf32>
      %56 = arith.mulf %55, %49 : vector<8x1xf32>
      %c0_41 = arith.constant 0 : index
      %c0_42 = arith.constant 0 : index
      %57 = vector.load %arg10[%c0_41, %c0_42] : memref<8x1xf32, #tpu.memory_space<vmem>>, vector<8x1xf32>
      %58 = arith.addf %56, %57 : vector<8x1xf32>
      %c0_43 = arith.constant 0 : index
      %c0_44 = arith.constant 0 : index
      %59 = vector.load %arg6[%c0_43, %c0_44] : memref<8x1xf32, #tpu.memory_space<vmem>>, vector<8x1xf32>
      %60 = arith.addf %59, %58 : vector<8x1xf32>
      %c0_45 = arith.constant 0 : index
      %c0_46 = arith.constant 0 : index
      %61 = vector.load %arg6[%c0_45, %c0_46] : memref<8x1xf32, #tpu.memory_space<vmem>>, vector<8x1xf32>
      tpu.vector_store %arg6[%c0_45, %c0_46], %60 {strides = array<i32>} : memref<8x1xf32, #tpu.memory_space<vmem>>, vector<8x1xf32>,
    } else {
    }
    %c0_i32_30 = arith.constant 0 : i32
    %42 = arith.cmpi eq, %arg1, %c0_i32_30 : i32
    %c0_i32_31 = arith.constant 0 : i32
    %43 = arith.cmpi eq, %arg2, %c0_i32_31 : i32
    %44 = arith.andi %42, %43 : i1
    %45 = arith.extui %44 : i1 to i32
    %c0_i32_32 = arith.constant 0 : i32
    %46 = arith.cmpi ne, %45, %c0_i32_32 : i32
    scf.if %46 {
      %c0_33 = arith.constant 0 : index
      %c0_34 = arith.constant 0 : index
      %47 = vector.load %arg6[%c0_33, %c0_34] : memref<8x1xf32, #tpu.memory_space<vmem>>, vector<8x1xf32>
      %48 = vector.shape_cast %47 : vector<8x1xf32> to vector<1x8x1xf32>
      %cst_35 = arith.constant dense<0.000000e+00> : vector<1xf32>
      %49 = vector.multi_reduction <add>, %48, %cst_35 [1, 2] : vector<1x8x1xf32> to vector<1xf32>
      %50 = vector.shape_cast %49 : vector<1xf32> to vector<1x1x1xf32>
      %51 = vector.extract %50[0, 0, 0] : f32 from vector<1x1x1xf32>
      %cst_36 = arith.constant 0.000000e+00 : f32
      %52 = vector.broadcast %cst_36 : f32 to vector<1x8x128xf32>
      %53 = vector.broadcast %51 : f32 to vector<1x8x128xf32>
      %54 = arith.addf %52, %53 : vector<1x8x128xf32>
      %c0_37 = arith.constant 0 : index
      %c0_38 = arith.constant 0 : index
      %c0_39 = arith.constant 0 : index
      %55 = vector.load %arg5[%c0_37, %c0_38, %c0_39] : memref<1x8x128xf32, #tpu.memory_space<vmem>>, vector<1x8x128xf32>
      tpu.vector_store %arg5[%c0_37, %c0_38, %c0_39], %54 {strides = array<i32>} : memref<1x8x128xf32, #tpu.memory_space<vmem>>, vector<1x8x128xf32>,
    } else {
    }
    return
  }
  func.func @transform_0(%arg0: i32, %arg1: i32, %arg2: i32) -> (i32, i32) {
    %c1_i32 = arith.constant 1 : i32
    %0 = arith.muli %arg0, %c1_i32 : i32
    %1 = arith.addi %0, %arg1 : i32
    %c0_i32 = arith.constant 0 : i32
    return %1, %arg2 : i32, i32
  }
  func.func @transform_1(%arg0: i32, %arg1: i32, %arg2: i32) -> (i32, i32) {
    %c1_i32 = arith.constant 1 : i32
    %0 = arith.muli %arg0, %c1_i32 : i32
    %1 = arith.addi %0, %arg1 : i32
    %c0_i32 = arith.constant 0 : i32
    return %1, %arg2 : i32, i32
  }
  func.func @transform_2(%arg0: i32, %arg1: i32, %arg2: i32) -> (i32, i32, i32) {
    %c0_i32 = arith.constant 0 : i32
    %c0_i32_0 = arith.constant 0 : i32
    %c0_i32_1 = arith.constant 0 : i32
    return %arg0, %c0_i32, %c0_i32_0 : i32, i32, i32
  }
}

</mosaic_0001>

<llo_original>
// kernel: tpu_custom_call.1
$region0: #{tpu_custom_call.1}
  #allocation0 [shape = 'u32[]', space=smem, size = 0x4, offset = 0x4, fixed_abs, tag = 'smem constant byte address 0x4 - core index']
  #allocation1 [shape = 'u32[144,128]{1,0:T(1,128)}', space=vmem, size = 0x12000, scoped, tag = 'internal scratch']
  #allocation2 [shape = 'f32[8,1]{1,0:T(8,128)}', space=vmem, size = 0x1000, scoped, tag = 'scratch operand']
  #allocation3 [shape = 'f32[8,1]{1,0:T(8,128)}', space=vmem, size = 0x1000, scoped, tag = 'scratch operand']
  #allocation4 [shape = 'f32[8,1]{1,0:T(8,128)}', space=vmem, size = 0x1000, scoped, tag = 'scratch operand']
  #allocation5 [shape = 'f32[8,1]{1,0:T(8,128)}', space=vmem, size = 0x1000, scoped, tag = 'scratch operand']
  #allocation6 [shape = 'f32[8,1]{1,0:T(8,128)}', space=vmem, size = 0x1000, scoped, tag = 'scratch operand']
  %s0 = inlined_call_operand.hbm [shape: f32[8,256], index: 0, kind: input, shape index: {}]
  %s1 = inlined_call_operand.hbm [shape: f32[8,256], index: 1, kind: input, shape index: {}]
  %s2 = inlined_call_operand.hbm [shape: f32[1,8,128], index: 2, kind: output, shape index: {}]
  %s3 = sld [smem:[#allocation0]]
  $region42: #{tpu_custom_call.1} parent=0
    _
  %s5 = ssub.s32 1, %s3
  %s6 = scalar_select 0, %s5, %s3
  $region1: #{tpu_custom_call.1} parent=0
    #allocation7 [shape = 'u8[8192]{0}', space=vmem, size = 0x2000, scoped, tag = 'input window, operand 0, single buffered']
    #allocation8 [shape = 's32[1]{0}', space=sflag, size = 0x4, scoped, tag = 'scoped memory for tpu_custom_call.1']
    #allocation9 [shape = 's32[1]{0}', space=sflag, size = 0x4, scoped, tag = 'scoped memory for tpu_custom_call.1']
    #allocation10 [shape = 'u8[8192]{0}', space=vmem, size = 0x2000, scoped, tag = 'input window, operand 1, single buffered']
    #allocation11 [shape = 's32[1]{0}', space=sflag, size = 0x4, scoped, tag = 'scoped memory for tpu_custom_call.1']
    #allocation12 [shape = 'u8[4096]{0}', space=vmem, size = 0x1000, scoped, tag = 'output window, operand 0, single buffered']
    %7 = vsyncpa [#allocation8], 0
    %8 = vsyncpa [#allocation11], 0
    %9 = vsyncpa [#allocation9], 0
    // Predicated region
    $region2: #{tpu_custom_call.1} parent=1 // pred_check
      _
    $region3: #{tpu_custom_call.1} parent=1 // pred_check_branch
      %11 = sbr.rel (0) target = $region5
    $region4: #{tpu_custom_call.1} parent=1 // pred_region
      %s12 = sadd.s32 0, 0
      %s14 = ssub.s32 256, 256
      %15 = vsyncadd [#allocation8], %s14
      %s16 = smul.addr %s12, 2
      %s17 = smul.addr %s16, 128
      %s18 = scalar_lea.hbm %s0, %s17
      %s20 = sshll.u32 [#allocation7], 4
      %s21 = int_to_ptr.vmem [resolvable:$true] %s20
      %23 = dma.hbm_to_vmem [thread:$0]  %s18, 256, %s21, [#allocation8]
    $region5: #{tpu_custom_call.1} parent=1 // pred_fallthru
      _
    // Predicated region
    $region6: #{tpu_custom_call.1} parent=1 // pred_check
      _
    $region7: #{tpu_custom_call.1} parent=1 // pred_check_branch
      %25 = sbr.rel (0) target = $region9
    $region8: #{tpu_custom_call.1} parent=1 // pred_region
      %s26 = sadd.s32 0, 0
      %s28 = ssub.s32 256, 256
      %29 = vsyncadd [#allocation11], %s28
      %s30 = smul.addr %s26, 2
      %s31 = smul.addr %s30, 128
      %s32 = scalar_lea.hbm %s1, %s31
      %s34 = sshll.u32 [#allocation10], 4
      %s35 = int_to_ptr.vmem [resolvable:$true] %s34
      %37 = dma.hbm_to_vmem [thread:$0]  %s32, 256, %s35, [#allocation11]
    $region9: #{tpu_custom_call.1} parent=1 // pred_fallthru
      _
    // Predicated region
    $region10: #{tpu_custom_call.1} parent=1 // pred_check
      _
    $region11: #{tpu_custom_call.1} parent=1 // pred_check_branch
      %39 = sbr.rel (0) target = $region13
    $region12: #{tpu_custom_call.1} parent=1 // pred_region
      %40 = dma.done [#allocation8], 256
    $region13: #{tpu_custom_call.1} parent=1 // pred_fallthru
      _
    // Predicated region
    $region14: #{tpu_custom_call.1} parent=1 // pred_check
      _
    $region15: #{tpu_custom_call.1} parent=1 // pred_check_branch
      %42 = sbr.rel (0) target = $region17
    $region16: #{tpu_custom_call.1} parent=1 // pred_region
      %43 = dma.done [#allocation11], 256
    $region17: #{tpu_custom_call.1} parent=1 // pred_fallthru
      _
    %s44 = sadd.s32 0, 0
    %s45 = sadd.s32 0, 0
    %p46 = scmp.eq.s32.totalorder 0, 0
    %p47 = scmp.eq.s32.totalorder 0, 0
    %p48 = pnand %p46, %p47
    %p49 = pneg %p48
    // Predicated region
    $region18: #{tpu_custom_call.1} parent=1 // pred_check
      _
    $region19: #{tpu_custom_call.1} parent=1 // pred_check_branch
      %51 = sbr.rel (%p48) target = $region21
    $region20: #{tpu_custom_call.1} parent=1 // pred_region
      %vm52 = vcmask 7168
      %53 = vst.msk [vmem:[#allocation2] sm:$0xff] %vm52, 0.0
    $region21: #{tpu_custom_call.1} parent=1 // pred_fallthru
      _
    // Predicated region
    $region22: #{tpu_custom_call.1} parent=1 // pred_check
      %p54 = pneg %p47
    $region23: #{tpu_custom_call.1} parent=1 // pred_check_branch
      %56 = sbr.rel (%p54) target = $region25
    $region24: #{tpu_custom_call.1} parent=1 // pred_region
      %vm57 = vcmask 7168
      %58 = vst.msk [vmem:[#allocation3] sm:$0xff] %vm57, -inf
      %59 = vst.msk [vmem:[#allocation4] sm:$0xff] %vm57, 0.0
      %60 = vst.msk [vmem:[#allocation5] sm:$0xff] %vm57, 0.0
      %61 = vst.msk [vmem:[#allocation6] sm:$0xff] %vm57, 0.0
    $region25: #{tpu_custom_call.1} parent=1 // pred_fallthru
      _
    %v62 = vld [vmem:[#allocation7] sm:$0xff]
    %v63 = vld [vmem:[#allocation7 + $0x8] sm:$0xff]
    %v64 = vld [vmem:[#allocation10] sm:$0xff]
    %v65 = vld [vmem:[#allocation10 + $0x8] sm:$0xff]
    %v66 = vld [vmem:[#allocation3] sm:$0xff]
    %v67 = vmax.f32 %v62, %v63
    %68 = vmax.xlane.f32.xlu0 %v67
    %v69 = vpop.xlane.xlu0 %68
    %v70 = vmax.f32 %v66, %v69
    %vm71 = vcmask 7168
    %72 = vst.msk [vmem:[#allocation3] sm:$0xff] %vm71, %v70
    %v73 = vsub.f32 1.1, %v64
    %v74 = vsub.f32 1.1, %v65
    %v75 = vrcp.pop %v73
    %v76 = vmul.f32 1.0, %v75
    %v77 = vrcp.pop %v74
    %v78 = vmul.f32 1.0, %v77
    %v79 = vmul.f32 %v62, %v76
    %v80 = vmul.f32 %v63, %v78
    %v81 = vmul.f32 %v64, %v76
    %v82 = vmul.f32 %v65, %v78
    %v83 = vld [vmem:[#allocation4] sm:$0xff]
    %v84 = vmul.f32 %v62, %v79
    %v85 = vmul.f32 %v63, %v80
    %v86 = vadd.f32 %v84, %v85
    %87 = vadd.xlane.f32.xlu0 %v86
    %v88 = vpop.xlane.xlu0 %87
    %v89 = vadd.f32 %v83, %v88
    %90 = vst.msk [vmem:[#allocation4] sm:$0xff] %vm71, %v89
    %v91 = vld [vmem:[#allocation5] sm:$0xff]
    %v92 = vmul.f32 %v62, %v81
    %v93 = vmul.f32 %v63, %v82
    %v94 = vadd.f32 %v92, %v93
    %95 = vadd.xlane.f32.xlu0 %v94
    %v96 = vpop.xlane.xlu0 %95
    %v97 = vadd.f32 %v91, %v96
    %98 = vst.msk [vmem:[#allocation5] sm:$0xff] %vm71, %v97
    %v99 = vld [vmem:[#allocation6] sm:$0xff]
    %v100 = vmul.f32 %v64, %v81
    %v101 = vmul.f32 %v65, %v82
    %v102 = vadd.f32 %v100, %v101
    %103 = vadd.xlane.f32.xlu0 %v102
    %v104 = vpop.xlane.xlu0 %103
    %v105 = vadd.f32 %v99, %v104
    %106 = vst.msk [vmem:[#allocation6] sm:$0xff] %vm71, %v105
    // Predicated region
    $region26: #{tpu_custom_call.1} parent=1 // pred_check
      %p107 = pneg %p47
    $region27: #{tpu_custom_call.1} parent=1 // pred_check_branch
      %109 = sbr.rel (%p107) target = $region29
    $region28: #{tpu_custom_call.1} parent=1 // pred_region
      %v110 = vld [vmem:[#allocation3] sm:$0xff]
      %v111 = vrcp.pop %v110
      %v112 = vmul.f32 1.0, %v111
      %v113 = vld [vmem:[#allocation4] sm:$0xff]
      %v114 = vmul.f32 %v113, %v112
      %v115 = vld [vmem:[#allocation5] sm:$0xff]
      %v116 = vmul.f32 %v115, 2.0
      %v117 = vsub.f32 %v114, %v116
      %v118 = vmul.f32 %v117, %v112
      %v119 = vld [vmem:[#allocation6] sm:$0xff]
      %v120 = vadd.f32 %v118, %v119
      %v121 = vld [vmem:[#allocation2] sm:$0xff]
      %v122 = vadd.f32 %v121, %v120
      %123 = vst.msk [vmem:[#allocation2] sm:$0xff] %vm71, %v122
    $region29: #{tpu_custom_call.1} parent=1 // pred_fallthru
      _
    // Predicated region
    $region30: #{tpu_custom_call.1} parent=1 // pred_check
      _
    $region31: #{tpu_custom_call.1} parent=1 // pred_check_branch
      %125 = sbr.rel (%p48) target = $region33
    $region32: #{tpu_custom_call.1} parent=1 // pred_region
      %v126 = vld [vmem:[#allocation2] sm:$0xff]
      %v127 = vsel %vm71, %v126, 0.0
      %128 = vadd.xlane.f32.xlu0 %v127
      %v129 = vpop.xlane.xlu0 %128
      %v130 = vrot.slane %v129, 4
      %v131 = vadd.f32 %v129, %v130
      %v132 = vrot.slane %v131, 2
      %v133 = vadd.f32 %v131, %v132
      %v134 = vrot.slane %v133, 1
      %v135 = vadd.f32 %v133, %v134
      %s136 = vtos %v135
      %v137 = vstv %s136
      %v138 = vadd.f32 %v137, 0.0
      %139 = vst [vmem:[#allocation12] sm:$0xff] %v138
    $region33: #{tpu_custom_call.1} parent=1 // pred_fallthru
      _
    // Predicated region
    $region34: #{tpu_custom_call.1} parent=1 // pred_check
      _
    $region35: #{tpu_custom_call.1} parent=1 // pred_check_branch
      %141 = sbr.rel (0) target = $region37
    $region36: #{tpu_custom_call.1} parent=1 // pred_region
      %s143 = ssub.s32 128, 128
      %144 = vsyncadd [#allocation9], %s143
      %s146 = sshll.u32 [#allocation12], 4
      %s147 = int_to_ptr.vmem [resolvable:$true] %s146
      %149 = dma.vmem_to_hbm [thread:$0]  %s147, 128, %s2, [#allocation9]
    $region37: #{tpu_custom_call.1} parent=1 // pred_fallthru
      _
    // Predicated region
    $region38: #{tpu_custom_call.1} parent=1 // pred_check
      _
    $region39: #{tpu_custom_call.1} parent=1 // pred_check_branch
      %151 = sbr.rel (0) target = $region41
    $region40: #{tpu_custom_call.1} parent=1 // pred_region
      %152 = dma.done [#allocation9], 128
    $region41: #{tpu_custom_call.1} parent=1 // pred_fallthru
      _
    %153 = vsyncpa [#allocation8], 1
    %154 = vsyncpa [#allocation11], 1
    %155 = vsyncpa [#allocation9], 1

</llo_original>
